<compile_context>
chip_gen: v7x
topology: tpu7x:2x2x1
jax: 0.10.0
libtpu: 0.0.40
codegen_flags: <defaults>
</compile_context>

<pallas_src>
import functools

import jax
import jax.numpy as jnp
from jax.experimental import pallas as pl
from jax.experimental.pallas import tpu as pltpu


def _round_up(x, m):
    return (x + m - 1) // m * m


def _softplus(z):
    # Numerically stable softplus: max(z,0) + log(1 + exp(-|z|)).
    # (log1p would be marginally more accurate near 0; this form is known to
    #  lower cleanly in Mosaic and the difference is << 1e-6.)
    return jnp.maximum(z, 0.0) + jnp.log(1.0 + jnp.exp(-jnp.abs(z)))


def mi_estimator_kernel(x1_ref, x1r_ref, x2_ref,
                        w1a_ref, w1b_ref, b1_ref, w2_ref, b2_ref,
                        w3_ref, b3_ref,
                        grad_ref, est_ref, *, batch, tile_b):
    i = pl.program_id(0)
    num_tiles = pl.num_programs(0)

    @pl.when(i == 0)
    def _init():
        grad_ref[...] = jnp.zeros_like(grad_ref)
        est_ref[...] = jnp.zeros_like(est_ref)

    md = w2_ref.dtype                      # matmul operand dtype (bf16 or f32)
    b1 = b1_ref[...]                       # [1, E]  f32
    b2 = b2_ref[...]                       # [1, E]  f32
    w3 = w3_ref[...]                       # [1, E]  f32 (final Linear(E,1) row)
    b3 = b3_ref[...]                       # [1, 1]  f32

    # ---- layer 1: shared x2 partial product + per-branch x1 matmuls --------
    shared = jnp.dot(x2_ref[...], w1b_ref[...],
                     preferred_element_type=jnp.float32) + b1          # [TB, E]
    h1_pos = jnp.dot(x1_ref[...], w1a_ref[...],
                     preferred_element_type=jnp.float32) + shared      # [TB, E]
    h1_neg = jnp.dot(x1r_ref[...], w1a_ref[...],
                     preferred_element_type=jnp.float32) + shared      # [TB, E]
    # Stack branches (f32, 8-row aligned) so layer 2 is one fused matmul.
    h1 = jnp.maximum(jnp.concatenate([h1_pos, h1_neg], axis=0), 0.0)   # [2TB, E]

    # ---- layer 2 ------------------------------------------------------------
    h2 = jnp.dot(h1.astype(md), w2_ref[...],
                 preferred_element_type=jnp.float32) + b2              # [2TB, E]
    h2 = jnp.maximum(h2, 0.0)

    # ---- layer 3: Linear(E, 1) as elementwise mul + lane reduction ----------
    out = jnp.sum(h2 * w3, axis=1, keepdims=True) + b3                 # [2TB, 1]
    pos = out[:tile_b]                                                 # [TB, 1]
    neg = out[tile_b:]                                                 # [TB, 1]

    # Mask padded batch rows (batch may not be a multiple of tile_b).
    row = jax.lax.broadcasted_iota(jnp.int32, (tile_b, 1), 0) + i * tile_b
    valid = (row < batch).astype(jnp.float32)

    grad_part = -jnp.sum(valid * (_softplus(-pos) + _softplus(neg)),
                         axis=0, keepdims=True)                        # [1, 1]
    est_part = jnp.sum(valid * (pos - jnp.exp(neg)),
                       axis=0, keepdims=True)                          # [1, 1]

    grad_ref[...] += grad_part
    est_ref[...] += est_part

    @pl.when(i == num_tiles - 1)
    def _finalize():
        inv_b = 1.0 / float(batch)
        grad_ref[...] = grad_ref[...] * inv_b
        est_ref[...] = est_ref[...] * inv_b + 1.0


@functools.partial(jax.jit, static_argnames=("tile_b", "matmul_dtype"))
def mi_estimator_forward(x1, x2, params, *, tile_b=128,
                         matmul_dtype=jnp.bfloat16):
    """Pallas-backed equivalent of MIEstimator.forward(x1, x2).

    params = (w1 [s1+s2, E], b1 [1, E], w2 [E, E], b2 [1, E], w3 [1, E], b3 [1, 1])
    (weights stored as [in, out], i.e. transposed vs. PyTorch).
    """
    w1, b1, w2, b2, w3, b3 = params
    B, s1 = x1.shape
    s2 = x2.shape[1]
    E = w2.shape[0]

    # Split W1 so the x2 contribution is shared between pos and neg branches.
    w1a = w1[:s1]                                     # [s1, E]
    w1b = w1[s1:]                                     # [s2, E]

    # Roll stays in the wrapper: with batch tiling the wrap-around row would
    # cross tile boundaries (pure index permutation, negligible cost).
    x1r = jnp.roll(x1, 1, axis=0)

    md = matmul_dtype
    x1_c, x1r_c, x2_c = x1.astype(md), x1r.astype(md), x2.astype(md)
    w1a_c, w1b_c, w2_c = w1a.astype(md), w1b.astype(md), w2.astype(md)

    # Batch tiling (sublane-aligned); padded rows are masked inside the kernel.
    tb = min(tile_b, _round_up(B, 8))
    padded_b = _round_up(B, tb)
    if padded_b != B:
        pad = padded_b - B
        x1_c = jnp.pad(x1_c, ((0, pad), (0, 0)))
        x1r_c = jnp.pad(x1r_c, ((0, pad), (0, 0)))
        x2_c = jnp.pad(x2_c, ((0, pad), (0, 0)))
    num_tiles = pl.cdiv(padded_b, tb)

    kernel = functools.partial(mi_estimator_kernel, batch=B, tile_b=tb)

    grid_spec = pltpu.PrefetchScalarGridSpec(
        num_scalar_prefetch=0,
        grid=(num_tiles,),
        in_specs=[
            # streamed per batch tile
            pl.BlockSpec((tb, s1), lambda i: (i, 0)),     # x1
            pl.BlockSpec((tb, s1), lambda i: (i, 0)),     # roll(x1, 1, 0)
            pl.BlockSpec((tb, s2), lambda i: (i, 0)),     # x2
            # weights: constant index_map -> DMA'd once, VMEM-resident
            pl.BlockSpec((s1, E), lambda i: (0, 0)),      # W1_top
            pl.BlockSpec((s2, E), lambda i: (0, 0)),      # W1_bot
            pl.BlockSpec((1, E), lambda i: (0, 0)),       # b1
            pl.BlockSpec((E, E), lambda i: (0, 0)),       # W2
            pl.BlockSpec((1, E), lambda i: (0, 0)),       # b2
            pl.BlockSpec((1, E), lambda i: (0, 0)),       # W3 (row)
            pl.BlockSpec((1, 1), lambda i: (0, 0)),       # b3
        ],
        out_specs=(
            pl.BlockSpec((1, 1), lambda i: (0, 0)),       # grad accumulator
            pl.BlockSpec((1, 1), lambda i: (0, 0)),       # est accumulator
        ),
    )

    grad, est = pl.pallas_call(
        kernel,
        out_shape=(
            jax.ShapeDtypeStruct((1, 1), jnp.float32),
            jax.ShapeDtypeStruct((1, 1), jnp.float32),
        ),
        grid_spec=grid_spec,
        compiler_params=pltpu.CompilerParams(
            dimension_semantics=("arbitrary",),   # serial accumulator over batch tiles
        ),
    )(x1_c, x1r_c, x2_c, w1a_c, w1b_c, b1, w2_c, b2, w3, b3)

    return grad[0, 0], est[0, 0]


def init_params(key, size1, size2, embed_size):
    """Deterministic synthetic parameters (nn.Linear-shaped, stored [in, out])."""
    in_dim = size1 + size2
    k1, k2, k3, k4, k5, k6 = jax.random.split(key, 6)
    s1 = 1.0 / jnp.sqrt(in_dim)
    s2 = 1.0 / jnp.sqrt(embed_size)
    w1 = jax.random.uniform(k1, (in_dim, embed_size), jnp.float32, -1, 1) * s1
    b1 = jax.random.uniform(k2, (1, embed_size), jnp.float32, -1, 1) * s1
    w2 = jax.random.uniform(k3, (embed_size, embed_size), jnp.float32, -1, 1) * s2
    b2 = jax.random.uniform(k4, (1, embed_size), jnp.float32, -1, 1) * s2
    w3 = jax.random.uniform(k5, (1, embed_size), jnp.float32, -1, 1) * s2
    b3 = jax.random.uniform(k6, (1, 1), jnp.float32, -1, 1) * s2
    return (w1, b1, w2, b2, w3, b3)


def reference_forward(x1, x2, params, matmul_dtype=jnp.float32):
    """Pure-JAX reference mirroring the PyTorch module (optionally with the
    same matmul-operand precision policy as the kernel)."""
    w1, b1, w2, b2, w3, b3 = params
    md = matmul_dtype

    def net(x):
        h = jnp.dot(x.astype(md), w1.astype(md),
                    preferred_element_type=jnp.float32) + b1
        h = jnp.maximum(h, 0.0)
        h = jnp.dot(h.astype(md), w2.astype(md),
                    preferred_element_type=jnp.float32) + b2
        h = jnp.maximum(h, 0.0)
        return jnp.sum(h * w3, axis=1, keepdims=True) + b3

    pos = net(jnp.concatenate([x1, x2], axis=1))
    neg = net(jnp.concatenate([jnp.roll(x1, 1, axis=0), x2], axis=1))
    sp = lambda z: jnp.maximum(z, 0.0) + jnp.log(1.0 + jnp.exp(-jnp.abs(z)))
    mi_grad = -jnp.mean(sp(-pos)) - jnp.mean(sp(neg))
    mi_est = jnp.mean(pos) - jnp.mean(jnp.exp(neg)) + 1.0
    return mi_grad, mi_est


if __name__ == "__main__":
    # Small synthetic shapes consistent with the module's forward:
    # x1: [batch, size1], x2: [batch, size2]; tile_b=8 -> 2 grid steps.
    batch, size1, size2, embed = 16, 64, 64, 256

    key = jax.random.PRNGKey(0)
    kx1, kx2, kp = jax.random.split(key, 3)
    x1 = jax.random.normal(kx1, (batch, size1), jnp.float32)
    x2 = jax.random.normal(kx2, (batch, size2), jnp.float32)
    params = init_params(kp, size1, size2, embed)

    # f32 matmul path: matches the original module's f32 semantics.
    g32, e32 = mi_estimator_forward(x1, x2, params, tile_b=8,
                                    matmul_dtype=jnp.float32)
    g32 = jax.block_until_ready(g32)
    e32 = jax.block_until_ready(e32)
    rg32, re32 = reference_forward(x1, x2, params, matmul_dtype=jnp.float32)
    assert jnp.allclose(g32, rg32, atol=1e-3, rtol=1e-3), (g32, rg32)
    assert jnp.allclose(e32, re32, atol=1e-3, rtol=1e-3), (e32, re32)

    # bf16 matmul path (default / fast): compare against a precision-matched
    # reference (bf16 operands, f32 accumulation).
    g16, e16 = mi_estimator_forward(x1, x2, params, tile_b=8)
    g16 = jax.block_until_ready(g16)
    e16 = jax.block_until_ready(e16)
    rg16, re16 = reference_forward(x1, x2, params, matmul_dtype=jnp.bfloat16)
    assert jnp.allclose(g16, rg16, atol=1e-3, rtol=1e-3), (g16, rg16)
    assert jnp.allclose(e16, re16, atol=1e-3, rtol=1e-3), (e16, re16)

    print("KERNEL_OK")
</pallas_src>

<mosaic_0001>
module attributes {stable_mosaic.version = 11 : i64} {
  func.func @mi_estimator_kernel(%arg0: i32, %arg1: memref<8x64xf32, #tpu.memory_space<vmem>>, %arg2: memref<8x64xf32, #tpu.memory_space<vmem>>, %arg3: memref<8x64xf32, #tpu.memory_space<vmem>>, %arg4: memref<64x256xf32, #tpu.memory_space<vmem>>, %arg5: memref<64x256xf32, #tpu.memory_space<vmem>>, %arg6: memref<1x256xf32, #tpu.memory_space<vmem>>, %arg7: memref<256x256xf32, #tpu.memory_space<vmem>>, %arg8: memref<1x256xf32, #tpu.memory_space<vmem>>, %arg9: memref<1x256xf32, #tpu.memory_space<vmem>>, %arg10: memref<1x1xf32, #tpu.memory_space<vmem>>, %arg11: memref<1x1xf32, #tpu.memory_space<vmem>>, %arg12: memref<1x1xf32, #tpu.memory_space<vmem>>) attributes {dimension_semantics = [#tpu.dimension_semantics<arbitrary>], iteration_bounds = array<i64: 2>, scalar_prefetch = 0 : i64, scratch_operands = 0 : i64, tpu.core_type = #tpu.core_type<tc>, window_params = [{transform_indices = @transform_0, window_bounds = array<i64: 8, 64>}, {transform_indices = @transform_1, window_bounds = array<i64: 8, 64>}, {transform_indices = @transform_2, window_bounds = array<i64: 8, 64>}, {pipeline_mode = #tpu.pipeline_mode<synchronous>, transform_indices = @transform_3, window_bounds = array<i64: 64, 256>}, {pipeline_mode = #tpu.pipeline_mode<synchronous>, transform_indices = @transform_4, window_bounds = array<i64: 64, 256>}, {pipeline_mode = #tpu.pipeline_mode<synchronous>, transform_indices = @transform_5, window_bounds = array<i64: 1, 256>}, {pipeline_mode = #tpu.pipeline_mode<synchronous>, transform_indices = @transform_6, window_bounds = array<i64: 256, 256>}, {pipeline_mode = #tpu.pipeline_mode<synchronous>, transform_indices = @transform_7, window_bounds = array<i64: 1, 256>}, {pipeline_mode = #tpu.pipeline_mode<synchronous>, transform_indices = @transform_8, window_bounds = array<i64: 1, 256>}, {pipeline_mode = #tpu.pipeline_mode<synchronous>, transform_indices = @transform_9, window_bounds = array<i64: 1, 1>}, {pipeline_mode = #tpu.pipeline_mode<synchronous>, transform_indices = @transform_10, window_bounds = array<i64: 1, 1>}, {pipeline_mode = #tpu.pipeline_mode<synchronous>, transform_indices = @transform_11, window_bounds = array<i64: 1, 1>}]} {
    %c0_i32 = arith.constant 0 : i32
    %0 = arith.cmpi eq, %arg0, %c0_i32 : i32
    %1 = arith.extui %0 : i1 to i32
    %c0_i32_0 = arith.constant 0 : i32
    %2 = arith.cmpi ne, %1, %c0_i32_0 : i32
    scf.if %2 {
      %cst_47 = arith.constant 0.000000e+00 : f32
      %87 = vector.broadcast %cst_47 : f32 to vector<1x1xf32>
      %c0_48 = arith.constant 0 : index
      %c0_49 = arith.constant 0 : index
      %88 = vector.load %arg11[%c0_48, %c0_49] : memref<1x1xf32, #tpu.memory_space<vmem>>, vector<1x1xf32>
      tpu.vector_store %arg11[%c0_48, %c0_49], %87 {strides = array<i32>} : memref<1x1xf32, #tpu.memory_space<vmem>>, vector<1x1xf32>,
      %cst_50 = arith.constant 0.000000e+00 : f32
      %89 = vector.broadcast %cst_50 : f32 to vector<1x1xf32>
      %c0_51 = arith.constant 0 : index
      %c0_52 = arith.constant 0 : index
      %90 = vector.load %arg12[%c0_51, %c0_52] : memref<1x1xf32, #tpu.memory_space<vmem>>, vector<1x1xf32>
      tpu.vector_store %arg12[%c0_51, %c0_52], %89 {strides = array<i32>} : memref<1x1xf32, #tpu.memory_space<vmem>>, vector<1x1xf32>,
    } else {
    }
    %c0 = arith.constant 0 : index
    %c0_1 = arith.constant 0 : index
    %3 = vector.load %arg6[%c0, %c0_1] : memref<1x256xf32, #tpu.memory_space<vmem>>, vector<1x256xf32>
    %c0_2 = arith.constant 0 : index
    %c0_3 = arith.constant 0 : index
    %4 = vector.load %arg8[%c0_2, %c0_3] : memref<1x256xf32, #tpu.memory_space<vmem>>, vector<1x256xf32>
    %c0_4 = arith.constant 0 : index
    %c0_5 = arith.constant 0 : index
    %5 = vector.load %arg9[%c0_4, %c0_5] : memref<1x256xf32, #tpu.memory_space<vmem>>, vector<1x256xf32>
    %c0_6 = arith.constant 0 : index
    %c0_7 = arith.constant 0 : index
    %6 = vector.load %arg10[%c0_6, %c0_7] : memref<1x1xf32, #tpu.memory_space<vmem>>, vector<1x1xf32>
    %c0_8 = arith.constant 0 : index
    %c0_9 = arith.constant 0 : index
    %7 = vector.load %arg3[%c0_8, %c0_9] : memref<8x64xf32, #tpu.memory_space<vmem>>, vector<8x64xf32>
    %c0_10 = arith.constant 0 : index
    %c0_11 = arith.constant 0 : index
    %8 = vector.load %arg5[%c0_10, %c0_11] : memref<64x256xf32, #tpu.memory_space<vmem>>, vector<64x256xf32>
    %cst = arith.constant dense<0.000000e+00> : vector<8x256xf32>
    %9 = tpu.matmul %7, %8, %cst {dimension_numbers = #tpu.dot_dimension_numbers<[1], [0], [0], [1], [0, 0, 1, 1], [], []>} : vector<8x64xf32>, vector<64x256xf32>, vector<8x256xf32> -> vector<8x256xf32>
    %10 = vector.broadcast %3 : vector<1x256xf32> to vector<8x256xf32>
    %11 = arith.addf %9, %10 : vector<8x256xf32>
    %c0_12 = arith.constant 0 : index
    %c0_13 = arith.constant 0 : index
    %12 = vector.load %arg1[%c0_12, %c0_13] : memref<8x64xf32, #tpu.memory_space<vmem>>, vector<8x64xf32>
    %c0_14 = arith.constant 0 : index
    %c0_15 = arith.constant 0 : index
    %13 = vector.load %arg4[%c0_14, %c0_15] : memref<64x256xf32, #tpu.memory_space<vmem>>, vector<64x256xf32>
    %cst_16 = arith.constant dense<0.000000e+00> : vector<8x256xf32>
    %14 = tpu.matmul %12, %13, %cst_16 {dimension_numbers = #tpu.dot_dimension_numbers<[1], [0], [0], [1], [0, 0, 1, 1], [], []>} : vector<8x64xf32>, vector<64x256xf32>, vector<8x256xf32> -> vector<8x256xf32>
    %15 = arith.addf %14, %11 : vector<8x256xf32>
    %c0_17 = arith.constant 0 : index
    %c0_18 = arith.constant 0 : index
    %16 = vector.load %arg2[%c0_17, %c0_18] : memref<8x64xf32, #tpu.memory_space<vmem>>, vector<8x64xf32>
    %c0_19 = arith.constant 0 : index
    %c0_20 = arith.constant 0 : index
    %17 = vector.load %arg4[%c0_19, %c0_20] : memref<64x256xf32, #tpu.memory_space<vmem>>, vector<64x256xf32>
    %cst_21 = arith.constant dense<0.000000e+00> : vector<8x256xf32>
    %18 = tpu.matmul %16, %17, %cst_21 {dimension_numbers = #tpu.dot_dimension_numbers<[1], [0], [0], [1], [0, 0, 1, 1], [], []>} : vector<8x64xf32>, vector<64x256xf32>, vector<8x256xf32> -> vector<8x256xf32>
    %19 = arith.addf %18, %11 : vector<8x256xf32>
    %20 = tpu.concatenate %15, %19 in 0 : vector<8x256xf32>, vector<8x256xf32> -> vector<16x256xf32>
    %cst_22 = arith.constant 0.000000e+00 : f32
    %21 = vector.broadcast %cst_22 : f32 to vector<16x256xf32>
    %22 = arith.maximumf %20, %21 : vector<16x256xf32>
    %c0_23 = arith.constant 0 : index
    %c0_24 = arith.constant 0 : index
    %23 = vector.load %arg7[%c0_23, %c0_24] : memref<256x256xf32, #tpu.memory_space<vmem>>, vector<256x256xf32>
    %cst_25 = arith.constant dense<0.000000e+00> : vector<16x256xf32>
    %24 = tpu.matmul %22, %23, %cst_25 {dimension_numbers = #tpu.dot_dimension_numbers<[1], [0], [0], [1], [0, 0, 1, 1], [], []>} : vector<16x256xf32>, vector<256x256xf32>, vector<16x256xf32> -> vector<16x256xf32>
    %25 = vector.broadcast %4 : vector<1x256xf32> to vector<16x256xf32>
    %26 = arith.addf %24, %25 : vector<16x256xf32>
    %cst_26 = arith.constant 0.000000e+00 : f32
    %27 = vector.broadcast %cst_26 : f32 to vector<16x256xf32>
    %28 = arith.maximumf %26, %27 : vector<16x256xf32>
    %29 = vector.broadcast %5 : vector<1x256xf32> to vector<16x256xf32>
    %30 = arith.mulf %28, %29 : vector<16x256xf32>
    %cst_27 = arith.constant dense<0.000000e+00> : vector<16xf32>
    %31 = vector.multi_reduction <add>, %30, %cst_27 [1] : vector<16x256xf32> to vector<16xf32>
    %32 = vector.shape_cast %31 : vector<16xf32> to vector<16x1xf32>
    %33 = vector.broadcast %6 : vector<1x1xf32> to vector<16x1xf32>
    %34 = arith.addf %32, %33 : vector<16x1xf32>
    %35 = vector.extract_strided_slice %34 {offsets = [0, 0], sizes = [8, 1], strides = [1, 1]} : vector<16x1xf32> to vector<8x1xf32>
    %36 = vector.extract_strided_slice %34 {offsets = [8, 0], sizes = [8, 1], strides = [1, 1]} : vector<16x1xf32> to vector<8x1xf32>
    %37 = tpu.iota {dimensions = array<i32: 0>} : vector<8x1xi32>
    %c8_i32 = arith.constant 8 : i32
    %38 = arith.muli %arg0, %c8_i32 : i32
    %39 = vector.broadcast %38 : i32 to vector<8x1xi32>
    %40 = arith.addi %37, %39 : vector<8x1xi32>
    %c16_i32 = arith.constant 16 : i32
    %41 = vector.broadcast %c16_i32 : i32 to vector<8x1xi32>
    %42 = arith.cmpi slt, %40, %41 : vector<8x1xi32>
    %43 = arith.extui %42 : vector<8x1xi1> to vector<8x1xi32>
    %44 = arith.sitofp %43 : vector<8x1xi32> to vector<8x1xf32>
    %cst_28 = arith.constant 0.000000e+00 : f32
    %45 = vector.broadcast %cst_28 : f32 to vector<8x1xf32>
    %46 = arith.subf %45, %35 : vector<8x1xf32>
    %cst_29 = arith.constant 0.000000e+00 : f32
    %47 = vector.broadcast %cst_29 : f32 to vector<8x1xf32>
    %48 = arith.maximumf %46, %47 : vector<8x1xf32>
    %49 = math.absf %46 : vector<8x1xf32>
    %cst_30 = arith.constant 0.000000e+00 : f32
    %50 = vector.broadcast %cst_30 : f32 to vector<8x1xf32>
    %51 = arith.subf %50, %49 : vector<8x1xf32>
    %52 = math.exp %51 : vector<8x1xf32>
    %cst_31 = arith.constant 1.000000e+00 : f32
    %53 = vector.broadcast %cst_31 : f32 to vector<8x1xf32>
    %54 = arith.addf %53, %52 : vector<8x1xf32>
    %55 = math.log %54 : vector<8x1xf32>
    %56 = arith.addf %48, %55 : vector<8x1xf32>
    %cst_32 = arith.constant 0.000000e+00 : f32
    %57 = vector.broadcast %cst_32 : f32 to vector<8x1xf32>
    %58 = arith.maximumf %36, %57 : vector<8x1xf32>
    %59 = math.absf %36 : vector<8x1xf32>
    %cst_33 = arith.constant 0.000000e+00 : f32
    %60 = vector.broadcast %cst_33 : f32 to vector<8x1xf32>
    %61 = arith.subf %60, %59 : vector<8x1xf32>
    %62 = math.exp %61 : vector<8x1xf32>
    %cst_34 = arith.constant 1.000000e+00 : f32
    %63 = vector.broadcast %cst_34 : f32 to vector<8x1xf32>
    %64 = arith.addf %63, %62 : vector<8x1xf32>
    %65 = math.log %64 : vector<8x1xf32>
    %66 = arith.addf %58, %65 : vector<8x1xf32>
    %67 = arith.addf %56, %66 : vector<8x1xf32>
    %68 = arith.mulf %44, %67 : vector<8x1xf32>
    %cst_35 = arith.constant dense<0.000000e+00> : vector<1xf32>
    %69 = vector.multi_reduction <add>, %68, %cst_35 [0] : vector<8x1xf32> to vector<1xf32>
    %70 = vector.shape_cast %69 : vector<1xf32> to vector<1x1xf32>
    %cst_36 = arith.constant 0.000000e+00 : f32
    %71 = vector.broadcast %cst_36 : f32 to vector<1x1xf32>
    %72 = arith.subf %71, %70 : vector<1x1xf32>
    %73 = math.exp %36 : vector<8x1xf32>
    %74 = arith.subf %35, %73 : vector<8x1xf32>
    %75 = arith.mulf %44, %74 : vector<8x1xf32>
    %cst_37 = arith.constant dense<0.000000e+00> : vector<1xf32>
    %76 = vector.multi_reduction <add>, %75, %cst_37 [0] : vector<8x1xf32> to vector<1xf32>
    %77 = vector.shape_cast %76 : vector<1xf32> to vector<1x1xf32>
    %c0_38 = arith.constant 0 : index
    %c0_39 = arith.constant 0 : index
    %78 = vector.load %arg11[%c0_38, %c0_39] : memref<1x1xf32, #tpu.memory_space<vmem>>, vector<1x1xf32>
    %79 = arith.addf %78, %72 : vector<1x1xf32>
    %c0_40 = arith.constant 0 : index
    %c0_41 = arith.constant 0 : index
    %80 = vector.load %arg11[%c0_40, %c0_41] : memref<1x1xf32, #tpu.memory_space<vmem>>, vector<1x1xf32>
    tpu.vector_store %arg11[%c0_40, %c0_41], %79 {strides = array<i32>} : memref<1x1xf32, #tpu.memory_space<vmem>>, vector<1x1xf32>,
    %c0_42 = arith.constant 0 : index
    %c0_43 = arith.constant 0 : index
    %81 = vector.load %arg12[%c0_42, %c0_43] : memref<1x1xf32, #tpu.memory_space<vmem>>, vector<1x1xf32>
    %82 = arith.addf %81, %77 : vector<1x1xf32>
    %c0_44 = arith.constant 0 : index
    %c0_45 = arith.constant 0 : index
    %83 = vector.load %arg12[%c0_44, %c0_45] : memref<1x1xf32, #tpu.memory_space<vmem>>, vector<1x1xf32>
    tpu.vector_store %arg12[%c0_44, %c0_45], %82 {strides = array<i32>} : memref<1x1xf32, #tpu.memory_space<vmem>>, vector<1x1xf32>,
    %c1_i32 = arith.constant 1 : i32
    %84 = arith.cmpi eq, %arg0, %c1_i32 : i32
    %85 = arith.extui %84 : i1 to i32
    %c0_i32_46 = arith.constant 0 : i32
    %86 = arith.cmpi ne, %85, %c0_i32_46 : i32
    scf.if %86 {
      %c0_47 = arith.constant 0 : index
      %c0_48 = arith.constant 0 : index
      %87 = vector.load %arg11[%c0_47, %c0_48] : memref<1x1xf32, #tpu.memory_space<vmem>>, vector<1x1xf32>
      %cst_49 = arith.constant 6.250000e-02 : f32
      %88 = vector.broadcast %cst_49 : f32 to vector<1x1xf32>
      %89 = arith.mulf %87, %88 : vector<1x1xf32>
      %c0_50 = arith.constant 0 : index
      %c0_51 = arith.constant 0 : index
      %90 = vector.load %arg11[%c0_50, %c0_51] : memref<1x1xf32, #tpu.memory_space<vmem>>, vector<1x1xf32>
      tpu.vector_store %arg11[%c0_50, %c0_51], %89 {strides = array<i32>} : memref<1x1xf32, #tpu.memory_space<vmem>>, vector<1x1xf32>,
      %c0_52 = arith.constant 0 : index
      %c0_53 = arith.constant 0 : index
      %91 = vector.load %arg12[%c0_52, %c0_53] : memref<1x1xf32, #tpu.memory_space<vmem>>, vector<1x1xf32>
      %cst_54 = arith.constant 6.250000e-02 : f32
      %92 = vector.broadcast %cst_54 : f32 to vector<1x1xf32>
      %93 = arith.mulf %91, %92 : vector<1x1xf32>
      %cst_55 = arith.constant 1.000000e+00 : f32
      %94 = vector.broadcast %cst_55 : f32 to vector<1x1xf32>
      %95 = arith.addf %93, %94 : vector<1x1xf32>
      %c0_56 = arith.constant 0 : index
      %c0_57 = arith.constant 0 : index
      %96 = vector.load %arg12[%c0_56, %c0_57] : memref<1x1xf32, #tpu.memory_space<vmem>>, vector<1x1xf32>
      tpu.vector_store %arg12[%c0_56, %c0_57], %95 {strides = array<i32>} : memref<1x1xf32, #tpu.memory_space<vmem>>, vector<1x1xf32>,
    } else {
    }
    return
  }
  func.func @transform_0(%arg0: i32) -> (i32, i32) {
    %c0_i32 = arith.constant 0 : i32
    %c0_i32_0 = arith.constant 0 : i32
    return %arg0, %c0_i32 : i32, i32
  }
  func.func @transform_1(%arg0: i32) -> (i32, i32) {
    %c0_i32 = arith.constant 0 : i32
    %c0_i32_0 = arith.constant 0 : i32
    return %arg0, %c0_i32 : i32, i32
  }
  func.func @transform_2(%arg0: i32) -> (i32, i32) {
    %c0_i32 = arith.constant 0 : i32
    %c0_i32_0 = arith.constant 0 : i32
    return %arg0, %c0_i32 : i32, i32
  }
  func.func @transform_3(%arg0: i32) -> (i32, i32) {
    %c0_i32 = arith.constant 0 : i32
    %c0_i32_0 = arith.constant 0 : i32
    %c0_i32_1 = arith.constant 0 : i32
    return %c0_i32, %c0_i32_0 : i32, i32
  }
  func.func @transform_4(%arg0: i32) -> (i32, i32) {
    %c0_i32 = arith.constant 0 : i32
    %c0_i32_0 = arith.constant 0 : i32
    %c0_i32_1 = arith.constant 0 : i32
    return %c0_i32, %c0_i32_0 : i32, i32
  }
  func.func @transform_5(%arg0: i32) -> (i32, i32) {
    %c0_i32 = arith.constant 0 : i32
    %c0_i32_0 = arith.constant 0 : i32
    %c0_i32_1 = arith.constant 0 : i32
    return %c0_i32, %c0_i32_0 : i32, i32
  }
  func.func @transform_6(%arg0: i32) -> (i32, i32) {
    %c0_i32 = arith.constant 0 : i32
    %c0_i32_0 = arith.constant 0 : i32
    %c0_i32_1 = arith.constant 0 : i32
    return %c0_i32, %c0_i32_0 : i32, i32
  }
  func.func @transform_7(%arg0: i32) -> (i32, i32) {
    %c0_i32 = arith.constant 0 : i32
    %c0_i32_0 = arith.constant 0 : i32
    %c0_i32_1 = arith.constant 0 : i32
    return %c0_i32, %c0_i32_0 : i32, i32
  }
  func.func @transform_8(%arg0: i32) -> (i32, i32) {
    %c0_i32 = arith.constant 0 : i32
    %c0_i32_0 = arith.constant 0 : i32
    %c0_i32_1 = arith.constant 0 : i32
    return %c0_i32, %c0_i32_0 : i32, i32
  }
  func.func @transform_9(%arg0: i32) -> (i32, i32) {
    %c0_i32 = arith.constant 0 : i32
    %c0_i32_0 = arith.constant 0 : i32
    %c0_i32_1 = arith.constant 0 : i32
    return %c0_i32, %c0_i32_0 : i32, i32
  }
  func.func @transform_10(%arg0: i32) -> (i32, i32) {
    %c0_i32 = arith.constant 0 : i32
    %c0_i32_0 = arith.constant 0 : i32
    %c0_i32_1 = arith.constant 0 : i32
    return %c0_i32, %c0_i32_0 : i32, i32
  }
  func.func @transform_11(%arg0: i32) -> (i32, i32) {
    %c0_i32 = arith.constant 0 : i32
    %c0_i32_0 = arith.constant 0 : i32
    %c0_i32_1 = arith.constant 0 : i32
    return %c0_i32, %c0_i32_0 : i32, i32
  }
}

</mosaic_0001>

<llo_original>
// kernel: mi_estimator_forward.1
$region0: #{mi_estimator_forward.1}
  #allocation0 [shape = 'u32[]', space=smem, size = 0x4, offset = 0x4, fixed_abs, tag = 'smem constant byte address 0x4 - core index']
  #allocation1 [shape = 'u32[144,128]{1,0:T(1,128)}', space=vmem, size = 0x12000, scoped, tag = 'internal scratch']
  #allocation2 [shape = 'f32[1,1]{1,0:T(1,128)S(1)}', space=vmem, size = 0x200, scoped, tag = 'scoped memory for mi_estimator_forward.1']
  %s0 = inlined_call_operand.vmem [shape: f32[16,64], index: 0, kind: input, shape index: {}]
  %s1 = inlined_call_operand.vmem [shape: f32[16,64], index: 1, kind: input, shape index: {}]
  %s2 = inlined_call_operand.vmem [shape: f32[16,64], index: 2, kind: input, shape index: {}]
  %s3 = inlined_call_operand.vmem [shape: f32[64,256], index: 3, kind: input, shape index: {}]
  %s4 = inlined_call_operand.vmem [shape: f32[64,256], index: 4, kind: input, shape index: {}]
  %s5 = inlined_call_operand.vmem [shape: f32[1,256], index: 5, kind: input, shape index: {}]
  %s6 = inlined_call_operand.vmem [shape: f32[256,256], index: 6, kind: input, shape index: {}]
  %s7 = inlined_call_operand.vmem [shape: f32[1,256], index: 7, kind: input, shape index: {}]
  %s8 = inlined_call_operand.vmem [shape: f32[1,256], index: 8, kind: input, shape index: {}]
  %s9 = inlined_call_operand.<no memory space> [shape: f32[1,1], index: 9, kind: input, shape index: {}]
  %s10 = inlined_call_operand.hbm [shape: f32[1,1], index: 10, kind: output, shape index: {0}]
  %s11 = inlined_call_operand.hbm [shape: f32[1,1], index: 11, kind: output, shape index: {1}]
  %12 = xla_tuple %s10, %s11
  %s13 = sld [smem:[#allocation0]]
  $region89: #{mi_estimator_forward.1} parent=0
    _
  %s15 = ssub.s32 1, %s13
  %s16 = scalar_select 0, %s15, %s13
  %v17 = vstv %s9
  %18 = vst [vmem:[#allocation2] sm:$0x1] %v17
  $region1: #{mi_estimator_forward.1} parent=0
    #allocation3 [shape = 'u8[512]{0}', space=vmem, size = 0x400, scoped, tag = 'output window, operand 0, single buffered']
    #allocation4 [shape = 's32[2]{0}', space=sflag, size = 0x8, scoped, tag = 'scoped memory for mi_estimator_forward.1']
    #allocation5 [shape = 'u8[512]{0}', space=vmem, size = 0x400, scoped, tag = 'output window, operand 1, single buffered']
    #allocation6 [shape = 's32[1]{0}', space=sflag, size = 0x4, scoped, tag = 'scoped memory for mi_estimator_forward.1']
    %19 = vsyncpa [#allocation4], 0
    %20 = vsyncpa [#allocation6], 0
    loop: start=0, step=1, limit=4
    $region2: #{mi_estimator_forward.1} parent=1 // loop_pre_header
      _
    $region3: #{mi_estimator_forward.1} parent=1 // loop_header
      %s22 = sphi 0, %s26
      %p23 = scmp.ge.s32.totalorder %s22, 4
      %s32 = sphi 0, %s34
      %s35 = sphi 0, %s32
      %s36 = sphi 0, %s35
      %s52 = sphi 0, %s36
      %s58 = sphi 0, %s60
      %s61 = sphi 0, %s58
      %s62 = sphi 0, %s61
      %s78 = sphi 0, %s62
      %s84 = sphi 0, %s86
      %s87 = sphi 0, %s84
      %s88 = sphi 0, %s87
      %s104 = sphi 0, %s88
      %s108 = sphi 0, %s108
      %s110 = sphi 0, %s108
      %s111 = sphi 0, %s110
      %s125 = sphi 0, %s111
      %s129 = sphi 0, %s129
      %s131 = sphi 0, %s129
      %s132 = sphi 0, %s131
      %s146 = sphi 0, %s132
      %s150 = sphi 0, %s150
      %s152 = sphi 0, %s150
      %s153 = sphi 0, %s152
      %s167 = sphi 0, %s153
      %s171 = sphi 0, %s171
      %s173 = sphi 0, %s171
      %s174 = sphi 0, %s173
      %s188 = sphi 0, %s174
      %s192 = sphi 0, %s192
      %s194 = sphi 0, %s192
      %s195 = sphi 0, %s194
      %s209 = sphi 0, %s195
      %s213 = sphi 0, %s213
      %s215 = sphi 0, %s213
      %s216 = sphi 0, %s215
      %s230 = sphi 0, %s216
      %s234 = sphi 0, %s234
      %s236 = sphi 0, %s234
      %s237 = sphi 0, %s236
      %s251 = sphi 0, %s237
      %s255 = sphi 0, %s255
      %s257 = sphi 0, %s255
      %s258 = sphi 0, %s257
      %s272 = sphi 0, %s258
      %s276 = sphi 0, %s276
      %s278 = sphi 0, %s276
      %s279 = sphi 0, %s278
      %s293 = sphi 0, %s279
    $region4: #{mi_estimator_forward.1} parent=1 // loop_header_branch
      %25 = sbr.rel (%p23) target = $region8
    $region5: #{mi_estimator_forward.1} parent=1 // loop_body
      %s27 = ssub.s32 %s22, 1
      %s28 = ssub.s32 %s22, 2
      %s29 = sadd.s32 %s22, 1
      %s30 = ssub.s32 %s22, %s29
      %p31 = scmp.eq.s32.totalorder %s30, 0
      %s33 = sadd.s32 %s32, 1
      %s34 = scalar_select %p31, %s32, %s33
      %p37 = pneg %p31
      %p38 = scmp.eq.s32.totalorder %s22, 1
      %p39 = por %p37, %p38
      %p40 = scmp.ne.s32.totalorder %s32, %s35
      %p41 = scmp.eq.s32.totalorder %s22, 0
      %p42 = por %p40, %p41
      %p43 = scmp.ne.s32.totalorder %s32, %s35
      %p44 = scmp.eq.s32.totalorder %s27, 1
      %p45 = por %p43, %p44
      %p46 = scmp.ne.s32.totalorder %s35, %s36
      %p47 = scmp.eq.s32.totalorder %s27, 0
      %p48 = por %p46, %p47
      %p49 = scmp.ne.s32.totalorder %s35, %s36
      %p50 = scmp.eq.s32.totalorder %s28, 1
      %p51 = por %p49, %p50
      %p53 = scmp.ne.s32.totalorder %s36, %s52
      %p54 = scmp.eq.s32.totalorder %s28, 0
      %p55 = por %p53, %p54
      %s56 = ssub.s32 %s22, %s29
      %p57 = scmp.eq.s32.totalorder %s56, 0
      %s59 = sadd.s32 %s58, 1
      %s60 = scalar_select %p57, %s58, %s59
      %p63 = pneg %p57
      %p64 = scmp.eq.s32.totalorder %s22, 1
      %p65 = por %p63, %p64
      %p66 = scmp.ne.s32.totalorder %s58, %s61
      %p67 = scmp.eq.s32.totalorder %s22, 0
      %p68 = por %p66, %p67
      %p69 = scmp.ne.s32.totalorder %s58, %s61
      %p70 = scmp.eq.s32.totalorder %s27, 1
      %p71 = por %p69, %p70
      %p72 = scmp.ne.s32.totalorder %s61, %s62
      %p73 = scmp.eq.s32.totalorder %s27, 0
      %p74 = por %p72, %p73
      %p75 = scmp.ne.s32.totalorder %s61, %s62
      %p76 = scmp.eq.s32.totalorder %s28, 1
      %p77 = por %p75, %p76
      %p79 = scmp.ne.s32.totalorder %s62, %s78
      %p80 = scmp.eq.s32.totalorder %s28, 0
      %p81 = por %p79, %p80
      %s82 = ssub.s32 %s22, %s29
      %p83 = scmp.eq.s32.totalorder %s82, 0
      %s85 = sadd.s32 %s84, 1
      %s86 = scalar_select %p83, %s84, %s85
      %p89 = pneg %p83
      %p90 = scmp.eq.s32.totalorder %s22, 1
      %p91 = por %p89, %p90
      %p92 = scmp.ne.s32.totalorder %s84, %s87
      %p93 = scmp.eq.s32.totalorder %s22, 0
      %p94 = por %p92, %p93
      %p95 = scmp.ne.s32.totalorder %s84, %s87
      %p96 = scmp.eq.s32.totalorder %s27, 1
      %p97 = por %p95, %p96
      %p98 = scmp.ne.s32.totalorder %s87, %s88
      %p99 = scmp.eq.s32.totalorder %s27, 0
      %p100 = por %p98, %p99
      %p101 = scmp.ne.s32.totalorder %s87, %s88
      %p102 = scmp.eq.s32.totalorder %s28, 1
      %p103 = por %p101, %p102
      %p105 = scmp.ne.s32.totalorder %s88, %s104
      %p106 = scmp.eq.s32.totalorder %s28, 0
      %p107 = por %p105, %p106
      %s109 = sadd.s32 %s108, 1
      %p112 = scmp.eq.s32.totalorder %s22, 1
      %p113 = scmp.ne.s32.totalorder %s108, %s110
      %p114 = scmp.eq.s32.totalorder %s22, 0
      %p115 = por %p113, %p114
      %p116 = scmp.ne.s32.totalorder %s108, %s110
      %p117 = scmp.eq.s32.totalorder %s27, 1
      %p118 = por %p116, %p117
      %p119 = scmp.ne.s32.totalorder %s110, %s111
      %p120 = scmp.eq.s32.totalorder %s27, 0
      %p121 = por %p119, %p120
      %p122 = scmp.ne.s32.totalorder %s110, %s111
      %p123 = scmp.eq.s32.totalorder %s28, 1
      %p124 = por %p122, %p123
      %p126 = scmp.ne.s32.totalorder %s111, %s125
      %p127 = scmp.eq.s32.totalorder %s28, 0
      %p128 = por %p126, %p127
      %s130 = sadd.s32 %s129, 1
      %p133 = scmp.eq.s32.totalorder %s22, 1
      %p134 = scmp.ne.s32.totalorder %s129, %s131
      %p135 = scmp.eq.s32.totalorder %s22, 0
      %p136 = por %p134, %p135
      %p137 = scmp.ne.s32.totalorder %s129, %s131
      %p138 = scmp.eq.s32.totalorder %s27, 1
      %p139 = por %p137, %p138
      %p140 = scmp.ne.s32.totalorder %s131, %s132
      %p141 = scmp.eq.s32.totalorder %s27, 0
      %p142 = por %p140, %p141
      %p143 = scmp.ne.s32.totalorder %s131, %s132
      %p144 = scmp.eq.s32.totalorder %s28, 1
      %p145 = por %p143, %p144
      %p147 = scmp.ne.s32.totalorder %s132, %s146
      %p148 = scmp.eq.s32.totalorder %s28, 0
      %p149 = por %p147, %p148
      %s151 = sadd.s32 %s150, 1
      %p154 = scmp.eq.s32.totalorder %s22, 1
      %p155 = scmp.ne.s32.totalorder %s150, %s152
      %p156 = scmp.eq.s32.totalorder %s22, 0
      %p157 = por %p155, %p156
      %p158 = scmp.ne.s32.totalorder %s150, %s152
      %p159 = scmp.eq.s32.totalorder %s27, 1
      %p160 = por %p158, %p159
      %p161 = scmp.ne.s32.totalorder %s152, %s153
      %p162 = scmp.eq.s32.totalorder %s27, 0
      %p163 = por %p161, %p162
      %p164 = scmp.ne.s32.totalorder %s152, %s153
      %p165 = scmp.eq.s32.totalorder %s28, 1
      %p166 = por %p164, %p165
      %p168 = scmp.ne.s32.totalorder %s153, %s167
      %p169 = scmp.eq.s32.totalorder %s28, 0
      %p170 = por %p168, %p169
      %s172 = sadd.s32 %s171, 1
      %p175 = scmp.eq.s32.totalorder %s22, 1
      %p176 = scmp.ne.s32.totalorder %s171, %s173
      %p177 = scmp.eq.s32.totalorder %s22, 0
      %p178 = por %p176, %p177
      %p179 = scmp.ne.s32.totalorder %s171, %s173
      %p180 = scmp.eq.s32.totalorder %s27, 1
      %p181 = por %p179, %p180
      %p182 = scmp.ne.s32.totalorder %s173, %s174
      %p183 = scmp.eq.s32.totalorder %s27, 0
      %p184 = por %p182, %p183
      %p185 = scmp.ne.s32.totalorder %s173, %s174
      %p186 = scmp.eq.s32.totalorder %s28, 1
      %p187 = por %p185, %p186
      %p189 = scmp.ne.s32.totalorder %s174, %s188
      %p190 = scmp.eq.s32.totalorder %s28, 0
      %p191 = por %p189, %p190
      %s193 = sadd.s32 %s192, 1
      %p196 = scmp.eq.s32.totalorder %s22, 1
      %p197 = scmp.ne.s32.totalorder %s192, %s194
      %p198 = scmp.eq.s32.totalorder %s22, 0
      %p199 = por %p197, %p198
      %p200 = scmp.ne.s32.totalorder %s192, %s194
      %p201 = scmp.eq.s32.totalorder %s27, 1
      %p202 = por %p200, %p201
      %p203 = scmp.ne.s32.totalorder %s194, %s195
      %p204 = scmp.eq.s32.totalorder %s27, 0
      %p205 = por %p203, %p204
      %p206 = scmp.ne.s32.totalorder %s194, %s195
      %p207 = scmp.eq.s32.totalorder %s28, 1
      %p208 = por %p206, %p207
      %p210 = scmp.ne.s32.totalorder %s195, %s209
      %p211 = scmp.eq.s32.totalorder %s28, 0
      %p212 = por %p210, %p211
      %s214 = sadd.s32 %s213, 1
      %p217 = scmp.eq.s32.totalorder %s22, 1
      %p218 = scmp.ne.s32.totalorder %s213, %s215
      %p219 = scmp.eq.s32.totalorder %s22, 0
      %p220 = por %p218, %p219
      %p221 = scmp.ne.s32.totalorder %s213, %s215
      %p222 = scmp.eq.s32.totalorder %s27, 1
      %p223 = por %p221, %p222
      %p224 = scmp.ne.s32.totalorder %s215, %s216
      %p225 = scmp.eq.s32.totalorder %s27, 0
      %p226 = por %p224, %p225
      %p227 = scmp.ne.s32.totalorder %s215, %s216
      %p228 = scmp.eq.s32.totalorder %s28, 1
      %p229 = por %p227, %p228
      %p231 = scmp.ne.s32.totalorder %s216, %s230
      %p232 = scmp.eq.s32.totalorder %s28, 0
      %p233 = por %p231, %p232
      %s235 = sadd.s32 %s234, 1
      %p238 = scmp.eq.s32.totalorder %s22, 1
      %p239 = scmp.ne.s32.totalorder %s234, %s236
      %p240 = scmp.eq.s32.totalorder %s22, 0
      %p241 = por %p239, %p240
      %p242 = scmp.ne.s32.totalorder %s234, %s236
      %p243 = scmp.eq.s32.totalorder %s27, 1
      %p244 = por %p242, %p243
      %p245 = scmp.ne.s32.totalorder %s236, %s237
      %p246 = scmp.eq.s32.totalorder %s27, 0
      %p247 = por %p245, %p246
      %p248 = scmp.ne.s32.totalorder %s236, %s237
      %p249 = scmp.eq.s32.totalorder %s28, 1
      %p250 = por %p248, %p249
      %p252 = scmp.ne.s32.totalorder %s237, %s251
      %p253 = scmp.eq.s32.totalorder %s28, 0
      %p254 = por %p252, %p253
      %s256 = sadd.s32 %s255, 1
      %p259 = scmp.eq.s32.totalorder %s22, 1
      %p260 = scmp.ne.s32.totalorder %s255, %s257
      %p261 = scmp.eq.s32.totalorder %s22, 0
      %p262 = por %p260, %p261
      %p263 = scmp.ne.s32.totalorder %s255, %s257
      %p264 = scmp.eq.s32.totalorder %s27, 1
      %p265 = por %p263, %p264
      %p266 = scmp.ne.s32.totalorder %s257, %s258
      %p267 = scmp.eq.s32.totalorder %s27, 0
      %p268 = por %p266, %p267
      %p269 = scmp.ne.s32.totalorder %s257, %s258
      %p270 = scmp.eq.s32.totalorder %s28, 1
      %p271 = por %p269, %p270
      %p273 = scmp.ne.s32.totalorder %s258, %s272
      %p274 = scmp.eq.s32.totalorder %s28, 0
      %p275 = por %p273, %p274
      %s277 = sadd.s32 %s276, 1
      %p280 = scmp.eq.s32.totalorder %s22, 1
      %p281 = scmp.ne.s32.totalorder %s276, %s278
      %p282 = scmp.eq.s32.totalorder %s22, 0
      %p283 = por %p281, %p282
      %p284 = scmp.ne.s32.totalorder %s276, %s278
      %p285 = scmp.eq.s32.totalorder %s27, 1
      %p286 = por %p284, %p285
      %p287 = scmp.ne.s32.totalorder %s278, %s279
      %p288 = scmp.eq.s32.totalorder %s27, 0
      %p289 = por %p287, %p288
      %p290 = scmp.ne.s32.totalorder %s278, %s279
      %p291 = scmp.eq.s32.totalorder %s28, 1
      %p292 = por %p290, %p291
      %p294 = scmp.ne.s32.totalorder %s279, %s293
      %p295 = scmp.eq.s32.totalorder %s28, 0
      %p296 = por %p294, %p295
      %p297 = scmp.le.s32.totalorder 1, %s22
      %p298 = scmp.lt.s32.totalorder %s22, 3
      %p299 = pnand %p297, %p298
      %p300 = pneg %p299
      // Predicated region
      $region9: #{mi_estimator_forward.1} parent=5 // pred_check
        _
      $region10: #{mi_estimator_forward.1} parent=5 // pred_check_branch
        %302 = sbr.rel (%p299) target = $region12
      $region11: #{mi_estimator_forward.1} parent=5 // pred_region
        %s303 = ssub.s32 %s22, 1
        // Predicated region
        $region13: #{mi_estimator_forward.1} parent=11 // pred_check
          %p304 = pneg %p121
        $region14: #{mi_estimator_forward.1} parent=11 // pred_check_branch
          %306 = sbr.rel (%p304) target = $region16
        $region15: #{mi_estimator_forward.1} parent=11 // pred_region
          _
        $region16: #{mi_estimator_forward.1} parent=11 // pred_fallthru
          _
        // Predicated region
        $region17: #{mi_estimator_forward.1} parent=11 // pred_check
          %p307 = pneg %p142
        $region18: #{mi_estimator_forward.1} parent=11 // pred_check_branch
          %309 = sbr.rel (%p307) target = $region20
        $region19: #{mi_estimator_forward.1} parent=11 // pred_region
          _
        $region20: #{mi_estimator_forward.1} parent=11 // pred_fallthru
          _
        // Predicated region
        $region21: #{mi_estimator_forward.1} parent=11 // pred_check
          %p310 = pneg %p163
        $region22: #{mi_estimator_forward.1} parent=11 // pred_check_branch
          %312 = sbr.rel (%p310) target = $region24
        $region23: #{mi_estimator_forward.1} parent=11 // pred_region
          _
        $region24: #{mi_estimator_forward.1} parent=11 // pred_fallthru
          _
        // Predicated region
        $region25: #{mi_estimator_forward.1} parent=11 // pred_check
          %p313 = pneg %p184
        $region26: #{mi_estimator_forward.1} parent=11 // pred_check_branch
          %315 = sbr.rel (%p313) target = $region28
        $region27: #{mi_estimator_forward.1} parent=11 // pred_region
          _
        $region28: #{mi_estimator_forward.1} parent=11 // pred_fallthru
          _
        // Predicated region
        $region29: #{mi_estimator_forward.1} parent=11 // pred_check
          %p316 = pneg %p205
        $region30: #{mi_estimator_forward.1} parent=11 // pred_check_branch
          %318 = sbr.rel (%p316) target = $region32
        $region31: #{mi_estimator_forward.1} parent=11 // pred_region
          _
        $region32: #{mi_estimator_forward.1} parent=11 // pred_fallthru
          _
        // Predicated region
        $region33: #{mi_estimator_forward.1} parent=11 // pred_check
          %p319 = pneg %p226
        $region34: #{mi_estimator_forward.1} parent=11 // pred_check_branch
          %321 = sbr.rel (%p319) target = $region36
        $region35: #{mi_estimator_forward.1} parent=11 // pred_region
          _
        $region36: #{mi_estimator_forward.1} parent=11 // pred_fallthru
          _
        // Predicated region
        $region37: #{mi_estimator_forward.1} parent=11 // pred_check
          %p322 = pneg %p247
        $region38: #{mi_estimator_forward.1} parent=11 // pred_check_branch
          %324 = sbr.rel (%p322) target = $region40
        $region39: #{mi_estimator_forward.1} parent=11 // pred_region
          _
        $region40: #{mi_estimator_forward.1} parent=11 // pred_fallthru
          _
      $region12: #{mi_estimator_forward.1} parent=5 // pred_fallthru
        _
      %p325 = scmp.lt.s32.totalorder %s22, 2
      // Predicated region
      $region41: #{mi_estimator_forward.1} parent=5 // pred_check
        %p326 = pneg %p325
      $region42: #{mi_estimator_forward.1} parent=5 // pred_check_branch
        %328 = sbr.rel (%p326) target = $region44
      $region43: #{mi_estimator_forward.1} parent=5 // pred_region
        // Predicated region
        $region45: #{mi_estimator_forward.1} parent=43 // pred_check
          %p329 = pneg %p42
        $region46: #{mi_estimator_forward.1} parent=43 // pred_check_branch
          %331 = sbr.rel (%p329) target = $region48
        $region47: #{mi_estimator_forward.1} parent=43 // pred_region
          %p332 = scmp.lt.s32.totalorder %s22, 1
          %s333 = scalar_select %p332, %s22, 1
          %s334 = smul.addr %s333, 8
          %s335 = scalar_lea.vmem %s0, %s334
        $region48: #{mi_estimator_forward.1} parent=43 // pred_fallthru
          _
        // Predicated region
        $region49: #{mi_estimator_forward.1} parent=43 // pred_check
          %p336 = pneg %p68
        $region50: #{mi_estimator_forward.1} parent=43 // pred_check_branch
          %338 = sbr.rel (%p336) target = $region52
        $region51: #{mi_estimator_forward.1} parent=43 // pred_region
          %p339 = scmp.lt.s32.totalorder %s22, 1
          %s340 = scalar_select %p339, %s22, 1
          %s341 = smul.addr %s340, 8
          %s342 = scalar_lea.vmem %s1, %s341
        $region52: #{mi_estimator_forward.1} parent=43 // pred_fallthru
          _
        // Predicated region
        $region53: #{mi_estimator_forward.1} parent=43 // pred_check
          %p343 = pneg %p94
        $region54: #{mi_estimator_forward.1} parent=43 // pred_check_branch
          %345 = sbr.rel (%p343) target = $region56
        $region55: #{mi_estimator_forward.1} parent=43 // pred_region
          %p346 = scmp.lt.s32.totalorder %s22, 1
          %s347 = scalar_select %p346, %s22, 1
          %s348 = smul.addr %s347, 8
          %s349 = scalar_lea.vmem %s2, %s348
        $region56: #{mi_estimator_forward.1} parent=43 // pred_fallthru
          _
      $region44: #{mi_estimator_forward.1} parent=5 // pred_fallthru
        _
      %p350 = scmp.le.s32.totalorder 1, %s22
      %p351 = scmp.lt.s32.totalorder %s22, 3
      %p352 = pnand %p350, %p351
      %p353 = pneg %p352
      // Predicated region
      $region57: #{mi_estimator_forward.1} parent=5 // pred_check
        _
      $region58: #{mi_estimator_forward.1} parent=5 // pred_check_branch
        %355 = sbr.rel (%p352) target = $region60
      $region59: #{mi_estimator_forward.1} parent=5 // pred_region
        %s356 = ssub.s32 %s22, 1
        %p357 = scmp.lt.s32.totalorder %s27, 1
        %s358 = scalar_select %p357, %s27, 1
        %s359 = smul.addr %s358, 8
        %s360 = scalar_lea.vmem %s0, %s359
        %p361 = pneg %p48
        %p362 = pneg %p45
        %p363 = scmp.lt.s32.totalorder %s27, 1
        %s364 = scalar_select %p363, %s27, 1
        %s365 = smul.addr %s364, 8
        %s366 = scalar_lea.vmem %s1, %s365
        %p367 = pneg %p74
        %p368 = pneg %p71
        %p369 = scmp.lt.s32.totalorder %s27, 1
        %s370 = scalar_select %p369, %s27, 1
        %s371 = smul.addr %s370, 8
        %s372 = scalar_lea.vmem %s2, %s371
        %p373 = pneg %p100
        %p374 = pneg %p97
        %p375 = pneg %p121
        %p376 = pneg %p118
        %p377 = pneg %p142
        %p378 = pneg %p139
        %p379 = pneg %p163
        %p380 = pneg %p160
        %p381 = pneg %p184
        %p382 = pneg %p181
        %p383 = pneg %p205
        %p384 = pneg %p202
        %p385 = pneg %p226
        %p386 = pneg %p223
        %p387 = pneg %p247
        %p388 = pneg %p244
        %p389 = pneg %p268
        %p390 = pneg %p265
        %p391 = pneg %p289
        %p392 = pneg %p286
        %p393 = scmp.lt.s32.totalorder %s27, 1
        %s394 = scalar_select %p393, %s27, 1
        %s395 = smul.addr %s394, 8
        %s396 = scalar_lea.vmem %s0, %s395
        %p397 = scmp.lt.s32.totalorder %s27, 1
        %s398 = scalar_select %p397, %s27, 1
        %s399 = smul.addr %s398, 8
        %s400 = scalar_lea.vmem %s1, %s399
        %p401 = scmp.lt.s32.totalorder %s27, 1
        %s402 = scalar_select %p401, %s27, 1
        %s403 = smul.addr %s402, 8
        %s404 = scalar_lea.vmem %s2, %s403
        %p405 = scmp.eq.s32.totalorder %s27, 0
        // Predicated region
        $region61: #{mi_estimator_forward.1} parent=59 // pred_check
          %p406 = pneg %p405
        $region62: #{mi_estimator_forward.1} parent=59 // pred_check_branch
          %408 = sbr.rel (%p406) target = $region64
        $region63: #{mi_estimator_forward.1} parent=59 // pred_region
          %vm409 = vcmask 0
          %410 = vst.msk [vmem:[#allocation3] sm:$0x1] %vm409, 0.0
          %411 = vst.msk [vmem:[#allocation5] sm:$0x1] %vm409, 0.0
        $region64: #{mi_estimator_forward.1} parent=59 // pred_fallthru
          _
        %v412 = vld [vmem:[%s5] sm:$0x3]
        %v413 = vld [vmem:[%s7] sm:$0x3]
        %v414 = vld [vmem:[%s8] sm:$0x3]
        %v415 = vld [vmem:[#allocation2] sm:$0x1]
        %v416 = vld [vmem:[%s404] sm:$0xff]
        %v417 = vld [vmem:[%s4] sm:$0xff]
        %v418 = vld [vmem:[%s4 + $0x8] sm:$0xff]
        %v419 = vld [vmem:[%s4 + $0x10] sm:$0xff]
        %v420 = vld [vmem:[%s4 + $0x18] sm:$0xff]
        %v421 = vld [vmem:[%s4 + $0x20] sm:$0xff]
        %v422 = vld [vmem:[%s4 + $0x28] sm:$0xff]
        %v423 = vld [vmem:[%s4 + $0x30] sm:$0xff]
        %v424 = vld [vmem:[%s4 + $0x38] sm:$0xff]
        %v425 = vld [vmem:[%s4 + $0x40] sm:$0xff]
        %v426 = vld [vmem:[%s4 + $0x48] sm:$0xff]
        %v427 = vld [vmem:[%s4 + $0x50] sm:$0xff]
        %v428 = vld [vmem:[%s4 + $0x58] sm:$0xff]
        %v429 = vld [vmem:[%s4 + $0x60] sm:$0xff]
        %v430 = vld [vmem:[%s4 + $0x68] sm:$0xff]
        %v431 = vld [vmem:[%s4 + $0x70] sm:$0xff]
        %v432 = vld [vmem:[%s4 + $0x78] sm:$0xff]
        %v434 = vlaneseq
        %v435 = vshrl.u32 %v434, 7
        %v436 = vsub.s32 0, %v435
        %v437 = vrot.slane %v412, %v436
        %v438 = vlaneseq
        %v439 = vshrl.u32 %v438, 7
        %v440 = vsub.s32 1, %v439
        %v441 = vrot.slane %v412, %v440
        %vm444 = vcmask 523264
        %v446 = vsel %vm444, %v416, 0
        %448 = vmatprep.subr.mxu0 %v418
        %449 = vmatpush1.msra.mxu0 %v417
        %450 = vmatprep.subr.mxu0 %v420
        %451 = vmatpush1.msra.mxu0 %v419
        %452 = vmatprep.subr.mxu0 %v422
        %453 = vmatpush1.msra.mxu0 %v421
        %454 = vmatprep.subr.mxu0 %v424
        %455 = vmatpush1.msra.mxu0 %v423
        %456 = vmatprep.subr.mxu0 %v426
        %457 = vmatpush1.msra.mxu0 %v425
        %458 = vmatprep.subr.mxu0 %v428
        %459 = vmatpush1.msra.mxu0 %v427
        %460 = vmatprep.subr.mxu0 %v430
        %461 = vmatpush1.msra.mxu0 %v429
        %462 = vmatprep.subr.mxu0 %v432
        %463 = vmatpush1.msra.mxu0 %v431
        %464 = vmatprep.subr.mxu0 0.0
        %465 = vmatpush1.msra.mxu0 0.0
        %466 = vmatprep.subr.mxu0 0.0
        %467 = vmatpush1.msra.mxu0 0.0
        %468 = vmatprep.subr.mxu0 0.0
        %469 = vmatpush1.msra.mxu0 0.0
        %470 = vmatprep.subr.mxu0 0.0
        %471 = vmatpush1.msra.mxu0 0.0
        %472 = vmatprep.subr.mxu0 0.0
        %473 = vmatpush1.msra.mxu0 0.0
        %474 = vmatprep.subr.mxu0 0.0
        %475 = vmatpush1.msra.mxu0 0.0
        %476 = vmatprep.subr.mxu0 0.0
        %477 = vmatpush1.msra.mxu0 0.0
        %478 = vmatprep.subr.mxu0 0.0
        %479 = vmatpush1.msra.mxu0 0.0
        %480 = vmatprep.subr.mxu0 0.0
        %481 = vmatpush1.msra.mxu0 0.0
        %482 = vmatprep.subr.mxu0 0.0
        %483 = vmatpush1.msra.mxu0 0.0
        %484 = vmatprep.subr.mxu0 0.0
        %485 = vmatpush1.msra.mxu0 0.0
        %486 = vmatprep.subr.mxu0 0.0
        %487 = vmatpush1.msra.mxu0 0.0
        %488 = vmatprep.subr.mxu0 0.0
        %489 = vmatpush1.msra.mxu0 0.0
        %490 = vmatprep.subr.mxu0 0.0
        %491 = vmatpush1.msra.mxu0 0.0
        %492 = vmatprep.subr.mxu0 0.0
        %493 = vmatpush1.msra.mxu0 0.0
        %494 = vmatprep.subr.mxu0 0.0
        %495 = vmatpush1.msra.mxu0 0.0
        %496 = vmatprep.subr.mxu0 0.0
        %497 = vmatpush1.msra.mxu0 0.0
        %498 = vmatprep.subr.mxu0 0.0
        %499 = vmatpush1.msra.mxu0 0.0
        %500 = vmatprep.subr.mxu0 0.0
        %501 = vmatpush1.msra.mxu0 0.0
        %502 = vmatprep.subr.mxu0 0.0
        %503 = vmatpush1.msra.mxu0 0.0
        %504 = vmatprep.subr.mxu0 0.0
        %505 = vmatpush1.msra.mxu0 0.0
        %506 = vmatprep.subr.mxu0 0.0
        %507 = vmatpush1.msra.mxu0 0.0
        %508 = vmatprep.subr.mxu0 0.0
        %509 = vmatpush1.msra.mxu0 0.0
        %510 = vmatprep.subr.mxu0 0.0
        %511 = vmatpush1.msra.mxu0 0.0
        %512 = vmatprep.mubr.f32.mxu0 0.0
        %513 = vmatmul.mubr.f32.gmra.mrb[0].mxu0 %v446
        %v514 = vpop.f32.mrb[0].mxu0
        %v515 = vadd.f32 %v437, %v514
        %v516 = vpop.f32.mrb[0].mxu0
        %v517 = vadd.f32 %v441, %v516
        %518 = vdwg.mxu0
        %v519 = vld [vmem:[%s396] sm:$0xff]
        %v520 = vld [vmem:[%s3] sm:$0xff]
        %v521 = vld [vmem:[%s3 + $0x8] sm:$0xff]
        %v522 = vld [vmem:[%s3 + $0x10] sm:$0xff]
        %v523 = vld [vmem:[%s3 + $0x18] sm:$0xff]
        %v524 = vld [vmem:[%s3 + $0x20] sm:$0xff]
        %v525 = vld [vmem:[%s3 + $0x28] sm:$0xff]
        %v526 = vld [vmem:[%s3 + $0x30] sm:$0xff]
        %v527 = vld [vmem:[%s3 + $0x38] sm:$0xff]
        %v528 = vld [vmem:[%s3 + $0x40] sm:$0xff]
        %v529 = vld [vmem:[%s3 + $0x48] sm:$0xff]
        %v530 = vld [vmem:[%s3 + $0x50] sm:$0xff]
        %v531 = vld [vmem:[%s3 + $0x58] sm:$0xff]
        %v532 = vld [vmem:[%s3 + $0x60] sm:$0xff]
        %v533 = vld [vmem:[%s3 + $0x68] sm:$0xff]
        %v534 = vld [vmem:[%s3 + $0x70] sm:$0xff]
        %v535 = vld [vmem:[%s3 + $0x78] sm:$0xff]
        %v537 = vsel %vm444, %v519, 0
        %539 = vmatprep.subr.mxu0 %v521
        %540 = vmatpush1.msra.mxu0 %v520
        %541 = vmatprep.subr.mxu0 %v523
        %542 = vmatpush1.msra.mxu0 %v522
        %543 = vmatprep.subr.mxu0 %v525
        %544 = vmatpush1.msra.mxu0 %v524
        %545 = vmatprep.subr.mxu0 %v527
        %546 = vmatpush1.msra.mxu0 %v526
        %547 = vmatprep.subr.mxu0 %v529
        %548 = vmatpush1.msra.mxu0 %v528
        %549 = vmatprep.subr.mxu0 %v531
        %550 = vmatpush1.msra.mxu0 %v530
        %551 = vmatprep.subr.mxu0 %v533
        %552 = vmatpush1.msra.mxu0 %v532
        %553 = vmatprep.subr.mxu0 %v535
        %554 = vmatpush1.msra.mxu0 %v534
        %555 = vmatprep.subr.mxu0 0.0
        %556 = vmatpush1.msra.mxu0 0.0
        %557 = vmatprep.subr.mxu0 0.0
        %558 = vmatpush1.msra.mxu0 0.0
        %559 = vmatprep.subr.mxu0 0.0
        %560 = vmatpush1.msra.mxu0 0.0
        %561 = vmatprep.subr.mxu0 0.0
        %562 = vmatpush1.msra.mxu0 0.0
        %563 = vmatprep.subr.mxu0 0.0
        %564 = vmatpush1.msra.mxu0 0.0
        %565 = vmatprep.subr.mxu0 0.0
        %566 = vmatpush1.msra.mxu0 0.0
        %567 = vmatprep.subr.mxu0 0.0
        %568 = vmatpush1.msra.mxu0 0.0
        %569 = vmatprep.subr.mxu0 0.0
        %570 = vmatpush1.msra.mxu0 0.0
        %571 = vmatprep.subr.mxu0 0.0
        %572 = vmatpush1.msra.mxu0 0.0
        %573 = vmatprep.subr.mxu0 0.0
        %574 = vmatpush1.msra.mxu0 0.0
        %575 = vmatprep.subr.mxu0 0.0
        %576 = vmatpush1.msra.mxu0 0.0
        %577 = vmatprep.subr.mxu0 0.0
        %578 = vmatpush1.msra.mxu0 0.0
        %579 = vmatprep.subr.mxu0 0.0
        %580 = vmatpush1.msra.mxu0 0.0
        %581 = vmatprep.subr.mxu0 0.0
        %582 = vmatpush1.msra.mxu0 0.0
        %583 = vmatprep.subr.mxu0 0.0
        %584 = vmatpush1.msra.mxu0 0.0
        %585 = vmatprep.subr.mxu0 0.0
        %586 = vmatpush1.msra.mxu0 0.0
        %587 = vmatprep.subr.mxu0 0.0
        %588 = vmatpush1.msra.mxu0 0.0
        %589 = vmatprep.subr.mxu0 0.0
        %590 = vmatpush1.msra.mxu0 0.0
        %591 = vmatprep.subr.mxu0 0.0
        %592 = vmatpush1.msra.mxu0 0.0
        %593 = vmatprep.subr.mxu0 0.0
        %594 = vmatpush1.msra.mxu0 0.0
        %595 = vmatprep.subr.mxu0 0.0
        %596 = vmatpush1.msra.mxu0 0.0
        %597 = vmatprep.subr.mxu0 0.0
        %598 = vmatpush1.msra.mxu0 0.0
        %599 = vmatprep.subr.mxu0 0.0
        %600 = vmatpush1.msra.mxu0 0.0
        %601 = vmatprep.subr.mxu0 0.0
        %602 = vmatpush1.msra.mxu0 0.0
        %603 = vmatprep.mubr.f32.mxu0 0.0
        %604 = vmatmul.mubr.f32.gmra.mrb[0].mxu0 %v537
        %v605 = vpop.f32.mrb[0].mxu0
        %v606 = vadd.f32 %v515, %v605
        %v607 = vpop.f32.mrb[0].mxu0
        %v608 = vadd.f32 %v517, %v607
        %609 = vdwg.mxu0
        %v610 = vld [vmem:[%s400] sm:$0xff]
        %v612 = vsel %vm444, %v610, 0
        %614 = vmatprep.subr.mxu0 %v521
        %615 = vmatpush1.msra.mxu0 %v520
        %616 = vmatprep.subr.mxu0 %v523
        %617 = vmatpush1.msra.mxu0 %v522
        %618 = vmatprep.subr.mxu0 %v525
        %619 = vmatpush1.msra.mxu0 %v524
        %620 = vmatprep.subr.mxu0 %v527
        %621 = vmatpush1.msra.mxu0 %v526
        %622 = vmatprep.subr.mxu0 %v529
        %623 = vmatpush1.msra.mxu0 %v528
        %624 = vmatprep.subr.mxu0 %v531
        %625 = vmatpush1.msra.mxu0 %v530
        %626 = vmatprep.subr.mxu0 %v533
        %627 = vmatpush1.msra.mxu0 %v532
        %628 = vmatprep.subr.mxu0 %v535
        %629 = vmatpush1.msra.mxu0 %v534
        %630 = vmatprep.subr.mxu0 0.0
        %631 = vmatpush1.msra.mxu0 0.0
        %632 = vmatprep.subr.mxu0 0.0
        %633 = vmatpush1.msra.mxu0 0.0
        %634 = vmatprep.subr.mxu0 0.0
        %635 = vmatpush1.msra.mxu0 0.0
        %636 = vmatprep.subr.mxu0 0.0
        %637 = vmatpush1.msra.mxu0 0.0
        %638 = vmatprep.subr.mxu0 0.0
        %639 = vmatpush1.msra.mxu0 0.0
        %640 = vmatprep.subr.mxu0 0.0
        %641 = vmatpush1.msra.mxu0 0.0
        %642 = vmatprep.subr.mxu0 0.0
        %643 = vmatpush1.msra.mxu0 0.0
        %644 = vmatprep.subr.mxu0 0.0
        %645 = vmatpush1.msra.mxu0 0.0
        %646 = vmatprep.subr.mxu0 0.0
        %647 = vmatpush1.msra.mxu0 0.0
        %648 = vmatprep.subr.mxu0 0.0
        %649 = vmatpush1.msra.mxu0 0.0
        %650 = vmatprep.subr.mxu0 0.0
        %651 = vmatpush1.msra.mxu0 0.0
        %652 = vmatprep.subr.mxu0 0.0
        %653 = vmatpush1.msra.mxu0 0.0
        %654 = vmatprep.subr.mxu0 0.0
        %655 = vmatpush1.msra.mxu0 0.0
        %656 = vmatprep.subr.mxu0 0.0
        %657 = vmatpush1.msra.mxu0 0.0
        %658 = vmatprep.subr.mxu0 0.0
        %659 = vmatpush1.msra.mxu0 0.0
        %660 = vmatprep.subr.mxu0 0.0
        %661 = vmatpush1.msra.mxu0 0.0
        %662 = vmatprep.subr.mxu0 0.0
        %663 = vmatpush1.msra.mxu0 0.0
        %664 = vmatprep.subr.mxu0 0.0
        %665 = vmatpush1.msra.mxu0 0.0
        %666 = vmatprep.subr.mxu0 0.0
        %667 = vmatpush1.msra.mxu0 0.0
        %668 = vmatprep.subr.mxu0 0.0
        %669 = vmatpush1.msra.mxu0 0.0
        %670 = vmatprep.subr.mxu0 0.0
        %671 = vmatpush1.msra.mxu0 0.0
        %672 = vmatprep.subr.mxu0 0.0
        %673 = vmatpush1.msra.mxu0 0.0
        %674 = vmatprep.subr.mxu0 0.0
        %675 = vmatpush1.msra.mxu0 0.0
        %676 = vmatprep.subr.mxu0 0.0
        %677 = vmatpush1.msra.mxu0 0.0
        %678 = vmatprep.mubr.f32.mxu0 0.0
        %679 = vmatmul.mubr.f32.gmra.mrb[0].mxu0 %v612
        %v680 = vpop.f32.mrb[0].mxu0
        %v681 = vadd.f32 %v515, %v680
        %v682 = vpop.f32.mrb[0].mxu0
        %v683 = vadd.f32 %v517, %v682
        %684 = vdwg.mxu0
        %v685 = vmax.f32 %v606, 0.0
        %v686 = vmax.f32 %v608, 0.0
        %v687 = vmax.f32 %v681, 0.0
        %v688 = vmax.f32 %v683, 0.0
        %v689 = vld [vmem:[%s6] sm:$0xff]
        %v690 = vld [vmem:[%s6 + $0x8] sm:$0xff]
        %v691 = vld [vmem:[%s6 + $0x10] sm:$0xff]
        %v692 = vld [vmem:[%s6 + $0x18] sm:$0xff]
        %v693 = vld [vmem:[%s6 + $0x20] sm:$0xff]
        %v694 = vld [vmem:[%s6 + $0x28] sm:$0xff]
        %v695 = vld [vmem:[%s6 + $0x30] sm:$0xff]
        %v696 = vld [vmem:[%s6 + $0x38] sm:$0xff]
        %v697 = vld [vmem:[%s6 + $0x40] sm:$0xff]
        %v698 = vld [vmem:[%s6 + $0x48] sm:$0xff]
        %v699 = vld [vmem:[%s6 + $0x50] sm:$0xff]
        %v700 = vld [vmem:[%s6 + $0x58] sm:$0xff]
        %v701 = vld [vmem:[%s6 + $0x60] sm:$0xff]
        %v702 = vld [vmem:[%s6 + $0x68] sm:$0xff]
        %v703 = vld [vmem:[%s6 + $0x70] sm:$0xff]
        %v704 = vld [vmem:[%s6 + $0x78] sm:$0xff]
        %v705 = vld [vmem:[%s6 + $0x80] sm:$0xff]
        %v706 = vld [vmem:[%s6 + $0x88] sm:$0xff]
        %v707 = vld [vmem:[%s6 + $0x90] sm:$0xff]
        %v708 = vld [vmem:[%s6 + $0x98] sm:$0xff]
        %v709 = vld [vmem:[%s6 + $0xa0] sm:$0xff]
        %v710 = vld [vmem:[%s6 + $0xa8] sm:$0xff]
        %v711 = vld [vmem:[%s6 + $0xb0] sm:$0xff]
        %v712 = vld [vmem:[%s6 + $0xb8] sm:$0xff]
        %v713 = vld [vmem:[%s6 + $0xc0] sm:$0xff]
        %v714 = vld [vmem:[%s6 + $0xc8] sm:$0xff]
        %v715 = vld [vmem:[%s6 + $0xd0] sm:$0xff]
        %v716 = vld [vmem:[%s6 + $0xd8] sm:$0xff]
        %v717 = vld [vmem:[%s6 + $0xe0] sm:$0xff]
        %v718 = vld [vmem:[%s6 + $0xe8] sm:$0xff]
        %v719 = vld [vmem:[%s6 + $0xf0] sm:$0xff]
        %v720 = vld [vmem:[%s6 + $0xf8] sm:$0xff]
        %v721 = vld [vmem:[%s6 + $0x100] sm:$0xff]
        %v722 = vld [vmem:[%s6 + $0x108] sm:$0xff]
        %v723 = vld [vmem:[%s6 + $0x110] sm:$0xff]
        %v724 = vld [vmem:[%s6 + $0x118] sm:$0xff]
        %v725 = vld [vmem:[%s6 + $0x120] sm:$0xff]
        %v726 = vld [vmem:[%s6 + $0x128] sm:$0xff]
        %v727 = vld [vmem:[%s6 + $0x130] sm:$0xff]
        %v728 = vld [vmem:[%s6 + $0x138] sm:$0xff]
        %v729 = vld [vmem:[%s6 + $0x140] sm:$0xff]
        %v730 = vld [vmem:[%s6 + $0x148] sm:$0xff]
        %v731 = vld [vmem:[%s6 + $0x150] sm:$0xff]
        %v732 = vld [vmem:[%s6 + $0x158] sm:$0xff]
        %v733 = vld [vmem:[%s6 + $0x160] sm:$0xff]
        %v734 = vld [vmem:[%s6 + $0x168] sm:$0xff]
        %v735 = vld [vmem:[%s6 + $0x170] sm:$0xff]
        %v736 = vld [vmem:[%s6 + $0x178] sm:$0xff]
        %v737 = vld [vmem:[%s6 + $0x180] sm:$0xff]
        %v738 = vld [vmem:[%s6 + $0x188] sm:$0xff]
        %v739 = vld [vmem:[%s6 + $0x190] sm:$0xff]
        %v740 = vld [vmem:[%s6 + $0x198] sm:$0xff]
        %v741 = vld [vmem:[%s6 + $0x1a0] sm:$0xff]
        %v742 = vld [vmem:[%s6 + $0x1a8] sm:$0xff]
        %v743 = vld [vmem:[%s6 + $0x1b0] sm:$0xff]
        %v744 = vld [vmem:[%s6 + $0x1b8] sm:$0xff]
        %v745 = vld [vmem:[%s6 + $0x1c0] sm:$0xff]
        %v746 = vld [vmem:[%s6 + $0x1c8] sm:$0xff]
        %v747 = vld [vmem:[%s6 + $0x1d0] sm:$0xff]
        %v748 = vld [vmem:[%s6 + $0x1d8] sm:$0xff]
        %v749 = vld [vmem:[%s6 + $0x1e0] sm:$0xff]
        %v750 = vld [vmem:[%s6 + $0x1e8] sm:$0xff]
        %v751 = vld [vmem:[%s6 + $0x1f0] sm:$0xff]
        %v752 = vld [vmem:[%s6 + $0x1f8] sm:$0xff]
        %v754 = vlaneseq
        %v755 = vshrl.u32 %v754, 7
        %v756 = vsub.s32 0, %v755
        %v757 = vrot.slane %v413, %v756
        %v758 = vlaneseq
        %v759 = vshrl.u32 %v758, 7
        %v760 = vsub.s32 1, %v759
        %v761 = vrot.slane %v413, %v760
        %764 = vmatprep.subr.mxu0 %v690
        %765 = vmatpush1.msra.mxu0 %v689
        %766 = vmatprep.subr.mxu0 %v692
        %767 = vmatpush1.msra.mxu0 %v691
        %768 = vmatprep.subr.mxu0 %v694
        %769 = vmatpush1.msra.mxu0 %v693
        %770 = vmatprep.subr.mxu0 %v696
        %771 = vmatpush1.msra.mxu0 %v695
        %772 = vmatprep.subr.mxu0 %v698
        %773 = vmatpush1.msra.mxu0 %v697
        %774 = vmatprep.subr.mxu0 %v700
        %775 = vmatpush1.msra.mxu0 %v699
        %776 = vmatprep.subr.mxu0 %v702
        %777 = vmatpush1.msra.mxu0 %v701
        %778 = vmatprep.subr.mxu0 %v704
        %779 = vmatpush1.msra.mxu0 %v703
        %780 = vmatprep.subr.mxu0 %v706
        %781 = vmatpush1.msra.mxu0 %v705
        %782 = vmatprep.subr.mxu0 %v708
        %783 = vmatpush1.msra.mxu0 %v707
        %784 = vmatprep.subr.mxu0 %v710
        %785 = vmatpush1.msra.mxu0 %v709
        %786 = vmatprep.subr.mxu0 %v712
        %787 = vmatpush1.msra.mxu0 %v711
        %788 = vmatprep.subr.mxu0 %v714
        %789 = vmatpush1.msra.mxu0 %v713
        %790 = vmatprep.subr.mxu0 %v716
        %791 = vmatpush1.msra.mxu0 %v715
        %792 = vmatprep.subr.mxu0 %v718
        %793 = vmatpush1.msra.mxu0 %v717
        %794 = vmatprep.subr.mxu0 %v720
        %795 = vmatpush1.msra.mxu0 %v719
        %796 = vmatprep.subr.mxu0 %v722
        %797 = vmatpush1.msra.mxu0 %v721
        %798 = vmatprep.subr.mxu0 %v724
        %799 = vmatpush1.msra.mxu0 %v723
        %800 = vmatprep.subr.mxu0 %v726
        %801 = vmatpush1.msra.mxu0 %v725
        %802 = vmatprep.subr.mxu0 %v728
        %803 = vmatpush1.msra.mxu0 %v727
        %804 = vmatprep.subr.mxu0 %v730
        %805 = vmatpush1.msra.mxu0 %v729
        %806 = vmatprep.subr.mxu0 %v732
        %807 = vmatpush1.msra.mxu0 %v731
        %808 = vmatprep.subr.mxu0 %v734
        %809 = vmatpush1.msra.mxu0 %v733
        %810 = vmatprep.subr.mxu0 %v736
        %811 = vmatpush1.msra.mxu0 %v735
        %812 = vmatprep.subr.mxu0 %v738
        %813 = vmatpush1.msra.mxu0 %v737
        %814 = vmatprep.subr.mxu0 %v740
        %815 = vmatpush1.msra.mxu0 %v739
        %816 = vmatprep.subr.mxu0 %v742
        %817 = vmatpush1.msra.mxu0 %v741
        %818 = vmatprep.subr.mxu0 %v744
        %819 = vmatpush1.msra.mxu0 %v743
        %820 = vmatprep.subr.mxu0 %v746
        %821 = vmatpush1.msra.mxu0 %v745
        %822 = vmatprep.subr.mxu0 %v748
        %823 = vmatpush1.msra.mxu0 %v747
        %824 = vmatprep.subr.mxu0 %v750
        %825 = vmatpush1.msra.mxu0 %v749
        %826 = vmatprep.subr.mxu0 %v752
        %827 = vmatpush1.msra.mxu0 %v751
        %828 = vmatprep.mubr.f32.mxu0 %v686
        %829 = vmatmul.mubr.f32.gmra.mrb[0].mxu0 %v685
        %v830 = vpop.f32.mrb[0].mxu0
        %v831 = vadd.f32 %v757, %v830
        %v832 = vpop.f32.mrb[0].mxu0
        %v833 = vadd.f32 %v761, %v832
        %834 = vmatprep.mubr.f32.mxu0 %v688
        %835 = vmatmul.mubr.f32.gmra.mrb[0].mxu0 %v687
        %v836 = vpop.f32.mrb[0].mxu0
        %v837 = vadd.f32 %v757, %v836
        %v838 = vpop.f32.mrb[0].mxu0
        %v839 = vadd.f32 %v761, %v838
        %840 = vdwg.mxu0
        %v841 = vmax.f32 %v831, 0.0
        %v842 = vmax.f32 %v833, 0.0
        %v843 = vmax.f32 %v837, 0.0
        %v844 = vmax.f32 %v839, 0.0
        %v846 = vlaneseq
        %v847 = vshrl.u32 %v846, 7
        %v848 = vsub.s32 0, %v847
        %v849 = vrot.slane %v414, %v848
        %v850 = vlaneseq
        %v851 = vshrl.u32 %v850, 7
        %v852 = vsub.s32 1, %v851
        %v853 = vrot.slane %v414, %v852
        %v856 = vmul.f32 %v841, %v849
        %v857 = vmul.f32 %v842, %v853
        %v858 = vmul.f32 %v843, %v849
        %v859 = vmul.f32 %v844, %v853
        %v860 = vadd.f32 %v856, %v857
        %861 = vadd.xlane.f32.xlu0 %v860
        %v862 = vpop.xlane.xlu0 %861
        %v863 = vadd.f32 %v858, %v859
        %864 = vadd.xlane.f32.xlu0 %v863
        %v865 = vpop.xlane.xlu0 %864
        %v867 = vlaneseq
        %v868 = vshrl.u32 %v867, 7
        %v869 = vsub.s32 0, %v868
        %v870 = vrot.slane %v415, %v869
        %v872 = vadd.f32 %v862, %v870
        %v873 = vadd.f32 %v865, %v870
        %v874 = vlaneseq
        %v875 = vshrl.u32 %v874, 7
        %s876 = smul.u32 %s27, 8
        %v877 = vstv %s876
        %v878 = vadd.s32 %v875, %v877
        %vm879 = vcmp.lt.s32.totalorder %v878, 16
        %v880 = vsel %vm879, 1, 0
        %v881 = vcvt.s32.f32 %v880
        %v882 = vsub.f32 0.0, %v872
        %v883 = vmax.f32 %v882, 0.0
        %v884 = vand.u32 2147483647, %v882
        %v885 = vsub.f32 0.0, %v884
        %v886 = vmul.f32 %v885, 1.442695
        %v887 = vpow.pop %v886
        %v888 = vadd.f32 %v887, 1.0
        %v889 = vlog2.pop %v888
        %v890 = vmul.f32 %v889, 0.6931472
        %v891 = vadd.f32 %v883, %v890
        %v892 = vmax.f32 %v873, 0.0
        %v893 = vand.u32 2147483647, %v873
        %v894 = vsub.f32 0.0, %v893
        %v895 = vmul.f32 %v894, 1.442695
        %v896 = vpow.pop %v895
        %v897 = vadd.f32 %v896, 1.0
        %v898 = vlog2.pop %v897
        %v899 = vmul.f32 %v898, 0.6931472
        %v900 = vadd.f32 %v892, %v899
        %v901 = vadd.f32 %v891, %v900
        %v902 = vmul.f32 %v881, %v901
        %vm903 = vcmask 7168
        %v904 = vsel %vm903, %v902, 0.0
        %v905 = vrot.slane %v904, 4
        %v906 = vadd.f32 %v904, %v905
        %v907 = vrot.slane %v906, 2
        %v908 = vadd.f32 %v906, %v907
        %v909 = vrot.slane %v908, 1
        %v910 = vadd.f32 %v908, %v909
        %v911 = vsub.f32 0.0, %v910
        %v912 = vmul.f32 %v873, 1.442695
        %v913 = vpow.pop %v912
        %v914 = vsub.f32 %v872, %v913
        %v915 = vmul.f32 %v881, %v914
        %v916 = vsel %vm903, %v915, 0.0
        %v917 = vrot.slane %v916, 4
        %v918 = vadd.f32 %v916, %v917
        %v919 = vrot.slane %v918, 2
        %v920 = vadd.f32 %v918, %v919
        %v921 = vrot.slane %v920, 1
        %v922 = vadd.f32 %v920, %v921
        %v923 = vld [vmem:[#allocation3] sm:$0x1]
        %v924 = vadd.f32 %v923, %v911
        %vm925 = vcmask 0
        %926 = vst.msk [vmem:[#allocation3] sm:$0x1] %vm925, %v924
        %v927 = vld [vmem:[#allocation5] sm:$0x1]
        %v928 = vadd.f32 %v927, %v922
        %929 = vst.msk [vmem:[#allocation5] sm:$0x1] %vm925, %v928
        %p930 = scmp.eq.s32.totalorder %s27, 1
        // Predicated region
        $region65: #{mi_estimator_forward.1} parent=59 // pred_check
          %p931 = pneg %p930
        $region66: #{mi_estimator_forward.1} parent=59 // pred_check_branch
          %933 = sbr.rel (%p931) target = $region68
        $region67: #{mi_estimator_forward.1} parent=59 // pred_region
          %v934 = vld [vmem:[#allocation3] sm:$0x1]
          %v935 = vmul.f32 %v934, 0.0625
          %936 = vst.msk [vmem:[#allocation3] sm:$0x1] %vm925, %v935
          %v937 = vld [vmem:[#allocation5] sm:$0x1]
          %v938 = vmul.f32 %v937, 0.0625
          %v939 = vadd.f32 %v938, 1.0
          %940 = vst.msk [vmem:[#allocation5] sm:$0x1] %vm925, %v939
        $region68: #{mi_estimator_forward.1} parent=59 // pred_fallthru
          _
        // Predicated region
        $region69: #{mi_estimator_forward.1} parent=59 // pred_check
          %p941 = pneg %p265
        $region70: #{mi_estimator_forward.1} parent=59 // pred_check_branch
          %943 = sbr.rel (%p941) target = $region72
        $region71: #{mi_estimator_forward.1} parent=59 // pred_region
          %s945 = ssub.s32 16, 16
          %946 = vsyncadd [#allocation4], %s945
          %s948 = sshll.u32 [#allocation3], 4
          %s949 = int_to_ptr.vmem [resolvable:$true] %s948
          %951 = dma.vmem_to_hbm [thread:$0]  %s949, 16, %s10, [#allocation4]
        $region72: #{mi_estimator_forward.1} parent=59 // pred_fallthru
          _
        // Predicated region
        $region73: #{mi_estimator_forward.1} parent=59 // pred_check
          %p952 = pneg %p286
        $region74: #{mi_estimator_forward.1} parent=59 // pred_check_branch
          %954 = sbr.rel (%p952) target = $region76
        $region75: #{mi_estimator_forward.1} parent=59 // pred_region
          %s956 = ssub.s32 16, 16
          %957 = vsyncadd [#allocation6], %s956
          %s959 = sshll.u32 [#allocation5], 4
          %s960 = int_to_ptr.vmem [resolvable:$true] %s959
          %962 = dma.vmem_to_hbm [thread:$0]  %s960, 16, %s11, [#allocation6]
        $region76: #{mi_estimator_forward.1} parent=59 // pred_fallthru
          _
        // Predicated region
        $region77: #{mi_estimator_forward.1} parent=59 // pred_check
          %p963 = pneg %p265
        $region78: #{mi_estimator_forward.1} parent=59 // pred_check_branch
          %965 = sbr.rel (%p963) target = $region80
        $region79: #{mi_estimator_forward.1} parent=59 // pred_region
          %966 = dma.done [#allocation4], 16
        $region80: #{mi_estimator_forward.1} parent=59 // pred_fallthru
          _
        // Predicated region
        $region81: #{mi_estimator_forward.1} parent=59 // pred_check
          %p967 = pneg %p286
        $region82: #{mi_estimator_forward.1} parent=59 // pred_check_branch
          %969 = sbr.rel (%p967) target = $region84
        $region83: #{mi_estimator_forward.1} parent=59 // pred_region
          %970 = dma.done [#allocation6], 16
        $region84: #{mi_estimator_forward.1} parent=59 // pred_fallthru
          _
      $region60: #{mi_estimator_forward.1} parent=5 // pred_fallthru
        _
      %p971 = scmp.le.s32.totalorder 2, %s22
      // Predicated region
      $region85: #{mi_estimator_forward.1} parent=5 // pred_check
        %p972 = pneg %p971
      $region86: #{mi_estimator_forward.1} parent=5 // pred_check_branch
        %974 = sbr.rel (%p972) target = $region88
      $region87: #{mi_estimator_forward.1} parent=5 // pred_region
        %s975 = ssub.s32 %s22, 2
      $region88: #{mi_estimator_forward.1} parent=5 // pred_fallthru
        _
    $region6: #{mi_estimator_forward.1} parent=1 // loop_footer
      %s26 = sadd.s32 1, %s22
    $region7: #{mi_estimator_forward.1} parent=1 // loop_footer_branch
      %21 = sbr.rel target = $region3
    $region8: #{mi_estimator_forward.1} parent=1 // loop_exit
      _
    %976 = vsyncpa [#allocation4], 1
    %s977 = scalar_lea.sflag [#allocation4], 1
    %978 = vsyncpa %s977, 1
    %979 = vsyncpa [#allocation6], 1

</llo_original>
